<compile_context>
chip_gen: v7x
topology: tpu7x:2x2x1
jax: 0.10.0
libtpu: 0.0.40
codegen_flags: <defaults>
</compile_context>

<pallas_src>
import functools

import jax
import jax.numpy as jnp
from jax.experimental import pallas as pl
from jax.experimental.pallas import tpu as pltpu


def _round_up(x, m):
    return ((x + m - 1) // m) * m


def _soft_entropy_kernel(*refs, n_rows, tiles_per_split, blend):
    """One (tb, C) batch tile of soft cross-entropy.

    Grid: (num_splits [parallel], tiles_per_split [arbitrary/reduction]).
    Output block (1, tb, 1) holds per-row partial loss sums for this split and
    stays resident in VMEM across the reduction axis.
    """
    if blend:
        inp_ref, t1_ref, t2_ref, out_ref = refs
    else:
        inp_ref, t1_ref, out_ref = refs
        t2_ref = None

    p = pl.program_id(0)
    t = pl.program_id(1)

    @pl.when(t == 0)
    def _():
        out_ref[...] = jnp.zeros_like(out_ref)

    x = inp_ref[...].astype(jnp.float32)            # [tb, C] logits
    tgt = t1_ref[...].astype(jnp.float32)           # [tb, C] target logits
    if blend:
        # Fused: targets = 0.5 * (t1 + t2) (saves a full HBM round trip).
        tgt = 0.5 * (tgt + t2_ref[...].astype(jnp.float32))

    # log_softmax(x, axis=1), numerically stable.
    x_max = jnp.max(x, axis=1, keepdims=True)
    xs = x - x_max
    logp = xs - jnp.log(jnp.sum(jnp.exp(xs), axis=1, keepdims=True))

    # sum_c softmax(tgt)*logp == (sum_c e^{tgt-tmax}*logp) / (sum_c e^{tgt-tmax})
    t_max = jnp.max(tgt, axis=1, keepdims=True)
    te = jnp.exp(tgt - t_max)
    s_num = jnp.sum(te * logp, axis=1, keepdims=True)       # [tb, 1]
    s_den = jnp.sum(te, axis=1, keepdims=True)               # [tb, 1]
    row_loss = -s_num * pl.reciprocal(s_den, approx=True)    # [tb, 1]

    # Mask rows added by batch padding.
    tb = row_loss.shape[0]
    base = (p * tiles_per_split + t) * tb
    rows = base + jax.lax.broadcasted_iota(jnp.int32, (tb, 1), 0)
    row_loss = jnp.where(rows < n_rows, row_loss, 0.0)

    out_ref[...] += row_loss[None]                            # (1, tb, 1)


def soft_entropy_loss(inputs, targets_prob, targets_prob2=None, *,
                      tb=None, num_splits=None):
    """SoftEntropyLoss.forward as a Pallas TPU kernel.

    inputs        : [N, C] logits (results['prob'])
    targets_prob  : [N, C] logits (results_supvs['prob'])
    targets_prob2 : optional [N, C] logits (results_supvs2['prob']); if given,
                    targets = 0.5*(targets_prob + targets_prob2), fused in-kernel.

    Inputs may be f32 or bf16; all math runs in f32 inside the kernel.
    """
    n, c = inputs.shape
    blend = targets_prob2 is not None
    operands_raw = [inputs, targets_prob] + ([targets_prob2] if blend else [])
    n_inputs = len(operands_raw)

    # Sublane multiple depends on the narrowest input dtype (bf16 packs 16 rows).
    min_itemsize = min(op.dtype.itemsize for op in operands_raw)
    sublane = 8 * max(1, 4 // int(min_itemsize))

    # Parallel split: uses both TensorCores on v7x, harmless on v5e/v6e.
    if num_splits is None:
        num_splits = 2 if n > 8 else 1

    # Batch tile: biggest that keeps 2x-buffered inputs + f32 temporaries within
    # a conservative VMEM budget (v7x has only 64 MiB VMEM per TensorCore).
    if tb is None:
        vmem_budget = 40 << 20
        bytes_per_row = (2 * n_inputs + 4) * c * 4   # conservative, f32
        tb = (vmem_budget // bytes_per_row) // sublane * sublane
        tb = max(sublane, min(1024, tb))
    rows_per_split = pl.cdiv(n, num_splits)
    tb = min(tb, _round_up(rows_per_split, sublane))
    tiles_per_split = pl.cdiv(rows_per_split, tb)
    padded_n = num_splits * tiles_per_split * tb

    # TODO(synk): tile over the class axis (online softmax accumulation) when C
    # alone is too large for a single (sublane, C) block in VMEM.

    def pad(a):
        if padded_n == n:
            return a
        return jnp.pad(a, ((0, padded_n - n), (0, 0)))

    operands = [pad(a) for a in operands_raw]

    imap = lambda p, t: (p * tiles_per_split + t, 0)
    in_specs = [pl.BlockSpec((tb, c), imap) for _ in operands]
    out_spec = pl.BlockSpec((1, tb, 1), lambda p, t: (p, 0, 0))

    kernel = functools.partial(
        _soft_entropy_kernel,
        n_rows=n, tiles_per_split=tiles_per_split, blend=blend)

    in_bytes = sum(op.size * op.dtype.itemsize for op in operands)
    cost = pl.CostEstimate(
        flops=int(10 * padded_n * c),
        transcendentals=int(2 * padded_n * c),
        bytes_accessed=int(in_bytes + num_splits * tb * 4),
    )

    vmem_limit = min(64 << 20,
                     max(16 << 20, (2 * n_inputs + 4) * tb * c * 4 + (2 << 20)))

    partial_sums = pl.pallas_call(
        kernel,
        out_shape=jax.ShapeDtypeStruct((num_splits, tb, 1), jnp.float32),
        grid_spec=pl.GridSpec(
            grid=(num_splits, tiles_per_split),
            in_specs=in_specs,
            out_specs=out_spec,
        ),
        compiler_params=pltpu.CompilerParams(
            dimension_semantics=("parallel", "arbitrary"),
            vmem_limit_bytes=int(vmem_limit),
        ),
        cost_estimate=cost,
    )(*operands)

    # mean over the batch dim (0), sum over classes.
    return jnp.sum(partial_sums) / jnp.float32(n)


def _reference(inputs, targets_prob, targets_prob2=None):
    if targets_prob2 is not None:
        targets = 0.5 * (targets_prob + targets_prob2)
    else:
        targets = targets_prob
    log_probs = jax.nn.log_softmax(inputs, axis=1)
    t_sm = jax.nn.softmax(targets, axis=1)
    return jnp.sum(jnp.mean(-t_sm * log_probs, axis=0))


if __name__ == "__main__":
    key = jax.random.PRNGKey(0)
    k1, k2, k3 = jax.random.split(key, 3)

    N, C = 16, 128  # [batch, num_classes]
    results_prob = jax.random.normal(k1, (N, C), dtype=jnp.float32)
    supvs_prob = jax.random.normal(k2, (N, C), dtype=jnp.float32)
    supvs2_prob = jax.random.normal(k3, (N, C), dtype=jnp.float32)

    # Path 1: results_supvs2 is None (default in the PyTorch module).
    loss1 = jax.block_until_ready(soft_entropy_loss(results_prob, supvs_prob))
    ref1 = _reference(results_prob, supvs_prob)
    assert jnp.allclose(loss1, ref1, atol=1e-3, rtol=1e-3), (loss1, ref1)

    # Path 2: results_supvs2 provided; targets blend fused in-kernel.
    loss2 = jax.block_until_ready(
        soft_entropy_loss(results_prob, supvs_prob, supvs2_prob))
    ref2 = _reference(results_prob, supvs_prob, supvs2_prob)
    assert jnp.allclose(loss2, ref2, atol=1e-3, rtol=1e-3), (loss2, ref2)

    # Path 3: ragged batch (exercises padding + in-kernel row mask).
    Nr = 13
    loss3 = jax.block_until_ready(
        soft_entropy_loss(results_prob[:Nr], supvs_prob[:Nr], supvs2_prob[:Nr]))
    ref3 = _reference(results_prob[:Nr], supvs_prob[:Nr], supvs2_prob[:Nr])
    assert jnp.allclose(loss3, ref3, atol=1e-3, rtol=1e-3), (loss3, ref3)

    # Path 4: bf16 inputs (halved HBM traffic); math stays f32 in-kernel.
    loss4 = jax.block_until_ready(
        soft_entropy_loss(results_prob.astype(jnp.bfloat16),
                          supvs_prob.astype(jnp.bfloat16)))
    ref4 = _reference(results_prob.astype(jnp.bfloat16).astype(jnp.float32),
                      supvs_prob.astype(jnp.bfloat16).astype(jnp.float32))
    assert jnp.allclose(loss4, ref4, atol=2e-2, rtol=2e-2), (loss4, ref4)

    print("KERNEL_OK")
</pallas_src>

<mosaic_0001>
module attributes {stable_mosaic.version = 11 : i64} {
  func.func @_soft_entropy_kernel(%arg0: i32, %arg1: i32, %arg2: memref<8x128xf32, #tpu.memory_space<vmem>>, %arg3: memref<8x128xf32, #tpu.memory_space<vmem>>, %arg4: memref<1x8x1xf32, #tpu.memory_space<vmem>>) attributes {dimension_semantics = [#tpu.dimension_semantics<parallel>, #tpu.dimension_semantics<arbitrary>], iteration_bounds = array<i64: 2, 1>, scalar_prefetch = 0 : i64, scratch_operands = 0 : i64, tpu.core_type = #tpu.core_type<tc>, window_params = [{transform_indices = @transform_0, window_bounds = array<i64: 8, 128>}, {transform_indices = @transform_1, window_bounds = array<i64: 8, 128>}, {transform_indices = @transform_2, window_bounds = array<i64: 1, 8, 1>}]} {
    %c0_i32 = arith.constant 0 : i32
    %0 = arith.cmpi eq, %arg1, %c0_i32 : i32
    %1 = arith.extui %0 : i1 to i32
    %c0_i32_0 = arith.constant 0 : i32
    %2 = arith.cmpi ne, %1, %c0_i32_0 : i32
    scf.if %2 {
      %cst_16 = arith.constant 0.000000e+00 : f32
      %43 = vector.broadcast %cst_16 : f32 to vector<1x8x1xf32>
      %c0_17 = arith.constant 0 : index
      %c0_18 = arith.constant 0 : index
      %c0_19 = arith.constant 0 : index
      %44 = vector.load %arg4[%c0_17, %c0_18, %c0_19] : memref<1x8x1xf32, #tpu.memory_space<vmem>>, vector<1x8x1xf32>
      tpu.vector_store %arg4[%c0_17, %c0_18, %c0_19], %43 {strides = array<i32>} : memref<1x8x1xf32, #tpu.memory_space<vmem>>, vector<1x8x1xf32>,
    } else {
    }
    %c0 = arith.constant 0 : index
    %c0_1 = arith.constant 0 : index
    %3 = vector.load %arg2[%c0, %c0_1] : memref<8x128xf32, #tpu.memory_space<vmem>>, vector<8x128xf32>
    %c0_2 = arith.constant 0 : index
    %c0_3 = arith.constant 0 : index
    %4 = vector.load %arg3[%c0_2, %c0_3] : memref<8x128xf32, #tpu.memory_space<vmem>>, vector<8x128xf32>
    %cst = arith.constant dense<0xFF800000> : vector<8xf32>
    %5 = vector.multi_reduction <maximumf>, %3, %cst [1] : vector<8x128xf32> to vector<8xf32>
    %6 = vector.shape_cast %5 : vector<8xf32> to vector<8x1xf32>
    %7 = vector.broadcast %6 : vector<8x1xf32> to vector<8x128xf32>
    %8 = arith.subf %3, %7 : vector<8x128xf32>
    %9 = math.exp %8 : vector<8x128xf32>
    %cst_4 = arith.constant dense<0.000000e+00> : vector<8xf32>
    %10 = vector.multi_reduction <add>, %9, %cst_4 [1] : vector<8x128xf32> to vector<8xf32>
    %11 = vector.shape_cast %10 : vector<8xf32> to vector<8x1xf32>
    %12 = math.log %11 : vector<8x1xf32>
    %13 = vector.broadcast %12 : vector<8x1xf32> to vector<8x128xf32>
    %14 = arith.subf %8, %13 : vector<8x128xf32>
    %cst_5 = arith.constant dense<0xFF800000> : vector<8xf32>
    %15 = vector.multi_reduction <maximumf>, %4, %cst_5 [1] : vector<8x128xf32> to vector<8xf32>
    %16 = vector.shape_cast %15 : vector<8xf32> to vector<8x1xf32>
    %17 = vector.broadcast %16 : vector<8x1xf32> to vector<8x128xf32>
    %18 = arith.subf %4, %17 : vector<8x128xf32>
    %19 = math.exp %18 : vector<8x128xf32>
    %20 = arith.mulf %19, %14 : vector<8x128xf32>
    %cst_6 = arith.constant dense<0.000000e+00> : vector<8xf32>
    %21 = vector.multi_reduction <add>, %20, %cst_6 [1] : vector<8x128xf32> to vector<8xf32>
    %22 = vector.shape_cast %21 : vector<8xf32> to vector<8x1xf32>
    %cst_7 = arith.constant dense<0.000000e+00> : vector<8xf32>
    %23 = vector.multi_reduction <add>, %19, %cst_7 [1] : vector<8x128xf32> to vector<8xf32>
    %24 = vector.shape_cast %23 : vector<8xf32> to vector<8x1xf32>
    %cst_8 = arith.constant 0.000000e+00 : f32
    %25 = vector.broadcast %cst_8 : f32 to vector<8x1xf32>
    %26 = arith.subf %25, %22 : vector<8x1xf32>
    %27 = tpu.reciprocal %24 {approx = true} : vector<8x1xf32> -> vector<8x1xf32>
    %28 = arith.mulf %26, %27 : vector<8x1xf32>
    %c1_i32 = arith.constant 1 : i32
    %29 = arith.muli %arg0, %c1_i32 : i32
    %30 = arith.addi %29, %arg1 : i32
    %c8_i32 = arith.constant 8 : i32
    %31 = arith.muli %30, %c8_i32 : i32
    %32 = tpu.iota {dimensions = array<i32: 0>} : vector<8x1xi32>
    %33 = vector.broadcast %31 : i32 to vector<8x1xi32>
    %34 = arith.addi %33, %32 : vector<8x1xi32>
    %c16_i32 = arith.constant 16 : i32
    %35 = vector.broadcast %c16_i32 : i32 to vector<8x1xi32>
    %36 = arith.cmpi slt, %34, %35 : vector<8x1xi32>
    %cst_9 = arith.constant 0.000000e+00 : f32
    %37 = vector.broadcast %cst_9 : f32 to vector<8x1xf32>
    %38 = arith.select %36, %28, %37 : vector<8x1xi1>, vector<8x1xf32>
    %c0_10 = arith.constant 0 : index
    %c0_11 = arith.constant 0 : index
    %c0_12 = arith.constant 0 : index
    %39 = vector.load %arg4[%c0_10, %c0_11, %c0_12] : memref<1x8x1xf32, #tpu.memory_space<vmem>>, vector<1x8x1xf32>
    %40 = vector.shape_cast %38 : vector<8x1xf32> to vector<1x8x1xf32>
    %41 = arith.addf %39, %40 : vector<1x8x1xf32>
    %c0_13 = arith.constant 0 : index
    %c0_14 = arith.constant 0 : index
    %c0_15 = arith.constant 0 : index
    %42 = vector.load %arg4[%c0_13, %c0_14, %c0_15] : memref<1x8x1xf32, #tpu.memory_space<vmem>>, vector<1x8x1xf32>
    tpu.vector_store %arg4[%c0_13, %c0_14, %c0_15], %41 {strides = array<i32>} : memref<1x8x1xf32, #tpu.memory_space<vmem>>, vector<1x8x1xf32>,
    return
  }
  func.func @transform_0(%arg0: i32, %arg1: i32) -> (i32, i32) {
    %c1_i32 = arith.constant 1 : i32
    %0 = arith.muli %arg0, %c1_i32 : i32
    %1 = arith.addi %0, %arg1 : i32
    %c0_i32 = arith.constant 0 : i32
    %c0_i32_0 = arith.constant 0 : i32
    return %1, %c0_i32 : i32, i32
  }
  func.func @transform_1(%arg0: i32, %arg1: i32) -> (i32, i32) {
    %c1_i32 = arith.constant 1 : i32
    %0 = arith.muli %arg0, %c1_i32 : i32
    %1 = arith.addi %0, %arg1 : i32
    %c0_i32 = arith.constant 0 : i32
    %c0_i32_0 = arith.constant 0 : i32
    return %1, %c0_i32 : i32, i32
  }
  func.func @transform_2(%arg0: i32, %arg1: i32) -> (i32, i32, i32) {
    %c0_i32 = arith.constant 0 : i32
    %c0_i32_0 = arith.constant 0 : i32
    %c0_i32_1 = arith.constant 0 : i32
    return %arg0, %c0_i32, %c0_i32_0 : i32, i32, i32
  }
}

</mosaic_0001>

<llo_original>
// kernel: tpu_custom_call.1
$region0: #{tpu_custom_call.1}
  #allocation0 [shape = 'u32[]', space=smem, size = 0x4, offset = 0x4, fixed_abs, tag = 'smem constant byte address 0x4 - core index']
  #allocation1 [shape = 'u32[144,128]{1,0:T(1,128)}', space=vmem, size = 0x12000, scoped, tag = 'internal scratch']
  %s0 = inlined_call_operand.hbm [shape: f32[16,128], index: 0, kind: input, shape index: {}]
  %s1 = inlined_call_operand.hbm [shape: f32[16,128], index: 1, kind: input, shape index: {}]
  %s2 = inlined_call_operand.vmem [shape: f32[2,8,1], index: 2, kind: output, shape index: {}]
  %s3 = sld [smem:[#allocation0]]
  $region53: #{tpu_custom_call.1} parent=0
    _
  %s5 = ssub.s32 1, %s3
  %s6 = scalar_select 0, %s5, %s3
  $region1: #{tpu_custom_call.1} parent=0
    #allocation2 [shape = 'u8[8192]{0}', space=vmem, size = 0x2000, scoped, tag = 'input window, operand 0']
    #allocation3 [shape = 's32[2]{0}', space=sflag, size = 0x8, scoped, tag = 'scoped memory for tpu_custom_call.1']
    #allocation4 [shape = 'u8[8192]{0}', space=vmem, size = 0x2000, scoped, tag = 'input window, operand 1']
    #allocation5 [shape = 's32[2]{0}', space=sflag, size = 0x8, scoped, tag = 'scoped memory for tpu_custom_call.1']
    %7 = vsyncpa [#allocation3], 0
    %s8 = scalar_lea.sflag [#allocation3], 1
    %9 = vsyncpa %s8, 0
    %10 = vsyncpa [#allocation5], 0
    %s11 = scalar_lea.sflag [#allocation5], 1
    %12 = vsyncpa %s11, 0
    loop: start=0, step=1, limit=4
    $region2: #{tpu_custom_call.1} parent=1 // loop_pre_header
      _
    $region3: #{tpu_custom_call.1} parent=1 // loop_header
      %s14 = sphi 0, %s18
      %p15 = scmp.ge.s32.totalorder %s14, 4
      %s21 = sphi 0, %s33
      %s22 = sphi 0, %s29
      %s23 = sphi 0, %s21
      %s24 = sphi 0, %s22
      %s25 = sphi 0, %s23
      %s26 = sphi 0, %s24
      %s38 = sphi 0, %s40
      %s41 = sphi 0, %s38
      %s42 = sphi 0, %s41
      %s58 = sphi 0, %s42
      %s66 = sphi 0, %s68
      %s69 = sphi 0, %s66
      %s70 = sphi 0, %s69
      %s86 = sphi 0, %s70
      %s92 = sphi 0, %s94
      %s95 = sphi 0, %s92
      %s96 = sphi 0, %s95
      %s112 = sphi 0, %s96
    $region4: #{tpu_custom_call.1} parent=1 // loop_header_branch
      %17 = sbr.rel (%p15) target = $region8
    $region5: #{tpu_custom_call.1} parent=1 // loop_body
      %s19 = ssub.s32 %s14, 1
      %s20 = ssub.s32 %s14, 2
      %s27 = sadd.s32 1, %s22
      %p28 = scmp.ge.s32.totalorder %s27, 1
      %s29 = scalar_select %p28, 0, %s27
      %s30 = sadd.s32 1, %s21
      %s31 = scalar_select %p28, %s30, %s21
      %p32 = scmp.ge.s32.totalorder %s31, 2
      %s33 = scalar_select %p32, 0, %s31
      %s34 = sadd.s32 %s21, %s22
      %s35 = sadd.s32 %s33, %s29
      %s36 = ssub.s32 %s34, %s35
      %p37 = scmp.eq.s32.totalorder %s36, 0
      %s39 = sadd.s32 %s38, 1
      %s40 = scalar_select %p37, %s38, %s39
      %p43 = pneg %p37
      %p44 = scmp.eq.s32.totalorder %s14, 1
      %p45 = por %p43, %p44
      %p46 = scmp.ne.s32.totalorder %s38, %s41
      %p47 = scmp.eq.s32.totalorder %s14, 0
      %p48 = por %p46, %p47
      %p49 = scmp.ne.s32.totalorder %s38, %s41
      %p50 = scmp.eq.s32.totalorder %s19, 1
      %p51 = por %p49, %p50
      %p52 = scmp.ne.s32.totalorder %s41, %s42
      %p53 = scmp.eq.s32.totalorder %s19, 0
      %p54 = por %p52, %p53
      %p55 = scmp.ne.s32.totalorder %s41, %s42
      %p56 = scmp.eq.s32.totalorder %s20, 1
      %p57 = por %p55, %p56
      %p59 = scmp.ne.s32.totalorder %s42, %s58
      %p60 = scmp.eq.s32.totalorder %s20, 0
      %p61 = por %p59, %p60
      %s62 = sadd.s32 %s21, %s22
      %s63 = sadd.s32 %s33, %s29
      %s64 = ssub.s32 %s62, %s63
      %p65 = scmp.eq.s32.totalorder %s64, 0
      %s67 = sadd.s32 %s66, 1
      %s68 = scalar_select %p65, %s66, %s67
      %p71 = pneg %p65
      %p72 = scmp.eq.s32.totalorder %s14, 1
      %p73 = por %p71, %p72
      %p74 = scmp.ne.s32.totalorder %s66, %s69
      %p75 = scmp.eq.s32.totalorder %s14, 0
      %p76 = por %p74, %p75
      %p77 = scmp.ne.s32.totalorder %s66, %s69
      %p78 = scmp.eq.s32.totalorder %s19, 1
      %p79 = por %p77, %p78
      %p80 = scmp.ne.s32.totalorder %s69, %s70
      %p81 = scmp.eq.s32.totalorder %s19, 0
      %p82 = por %p80, %p81
      %p83 = scmp.ne.s32.totalorder %s69, %s70
      %p84 = scmp.eq.s32.totalorder %s20, 1
      %p85 = por %p83, %p84
      %p87 = scmp.ne.s32.totalorder %s70, %s86
      %p88 = scmp.eq.s32.totalorder %s20, 0
      %p89 = por %p87, %p88
      %s90 = ssub.s32 %s21, %s33
      %p91 = scmp.eq.s32.totalorder %s90, 0
      %s93 = sadd.s32 %s92, 1
      %s94 = scalar_select %p91, %s92, %s93
      %p97 = pneg %p91
      %p98 = scmp.eq.s32.totalorder %s14, 1
      %p99 = por %p97, %p98
      %p100 = scmp.ne.s32.totalorder %s92, %s95
      %p101 = scmp.eq.s32.totalorder %s14, 0
      %p102 = por %p100, %p101
      %p103 = scmp.ne.s32.totalorder %s92, %s95
      %p104 = scmp.eq.s32.totalorder %s19, 1
      %p105 = por %p103, %p104
      %p106 = scmp.ne.s32.totalorder %s95, %s96
      %p107 = scmp.eq.s32.totalorder %s19, 0
      %p108 = por %p106, %p107
      %p109 = scmp.ne.s32.totalorder %s95, %s96
      %p110 = scmp.eq.s32.totalorder %s20, 1
      %p111 = por %p109, %p110
      %p113 = scmp.ne.s32.totalorder %s96, %s112
      %p114 = scmp.eq.s32.totalorder %s20, 0
      %p115 = por %p113, %p114
      %p116 = scmp.le.s32.totalorder 1, %s14
      %p117 = scmp.lt.s32.totalorder %s14, 3
      %p118 = pnand %p116, %p117
      %p119 = pneg %p118
      // Predicated region
      $region9: #{tpu_custom_call.1} parent=5 // pred_check
        _
      $region10: #{tpu_custom_call.1} parent=5 // pred_check_branch
        %121 = sbr.rel (%p118) target = $region12
      $region11: #{tpu_custom_call.1} parent=5 // pred_region
        %s122 = ssub.s32 %s14, 1
      $region12: #{tpu_custom_call.1} parent=5 // pred_fallthru
        _
      %p123 = scmp.lt.s32.totalorder %s14, 2
      // Predicated region
      $region13: #{tpu_custom_call.1} parent=5 // pred_check
        %p124 = pneg %p123
      $region14: #{tpu_custom_call.1} parent=5 // pred_check_branch
        %126 = sbr.rel (%p124) target = $region16
      $region15: #{tpu_custom_call.1} parent=5 // pred_region
        // Predicated region
        $region17: #{tpu_custom_call.1} parent=15 // pred_check
          %p127 = pneg %p48
        $region18: #{tpu_custom_call.1} parent=15 // pred_check_branch
          %129 = sbr.rel (%p127) target = $region20
        $region19: #{tpu_custom_call.1} parent=15 // pred_region
          %s130 = sand.u32 %s38, 1
          %s131 = scalar_lea.sflag [#allocation3], %s130
          %s132 = sand.u32 %s38, 1
          %s133 = smul.addr %s132, 8
          %s134 = scalar_lea.vmem [#allocation2], %s133
          %s135 = sadd.s32 %s21, %s22
          %s137 = ssub.s32 128, 128
          %138 = vsyncadd %s131, %s137
          %s139 = smul.addr %s135, 128
          %s140 = scalar_lea.hbm %s0, %s139
          %s142 = sshll.u32 %s134, 4
          %s143 = int_to_ptr.vmem [resolvable:$true] %s142
          %145 = dma.hbm_to_vmem [thread:$0]  %s140, 128, %s143, %s131
        $region20: #{tpu_custom_call.1} parent=15 // pred_fallthru
          _
        // Predicated region
        $region21: #{tpu_custom_call.1} parent=15 // pred_check
          %p146 = pneg %p76
        $region22: #{tpu_custom_call.1} parent=15 // pred_check_branch
          %148 = sbr.rel (%p146) target = $region24
        $region23: #{tpu_custom_call.1} parent=15 // pred_region
          %s149 = sand.u32 %s66, 1
          %s150 = scalar_lea.sflag [#allocation5], %s149
          %s151 = sand.u32 %s66, 1
          %s152 = smul.addr %s151, 8
          %s153 = scalar_lea.vmem [#allocation4], %s152
          %s154 = sadd.s32 %s21, %s22
          %s156 = ssub.s32 128, 128
          %157 = vsyncadd %s150, %s156
          %s158 = smul.addr %s154, 128
          %s159 = scalar_lea.hbm %s1, %s158
          %s161 = sshll.u32 %s153, 4
          %s162 = int_to_ptr.vmem [resolvable:$true] %s161
          %164 = dma.hbm_to_vmem [thread:$0]  %s159, 128, %s162, %s150
        $region24: #{tpu_custom_call.1} parent=15 // pred_fallthru
          _
      $region16: #{tpu_custom_call.1} parent=5 // pred_fallthru
        _
      %p165 = scmp.le.s32.totalorder 1, %s14
      %p166 = scmp.lt.s32.totalorder %s14, 3
      %p167 = pnand %p165, %p166
      %p168 = pneg %p167
      // Predicated region
      $region25: #{tpu_custom_call.1} parent=5 // pred_check
        _
      $region26: #{tpu_custom_call.1} parent=5 // pred_check_branch
        %170 = sbr.rel (%p167) target = $region28
      $region27: #{tpu_custom_call.1} parent=5 // pred_region
        %s171 = ssub.s32 %s14, 1
        %s172 = sand.u32 %s41, 1
        %s173 = scalar_lea.sflag [#allocation3], %s172
        %s174 = sand.u32 %s41, 1
        %s175 = smul.addr %s174, 8
        %s176 = scalar_lea.vmem [#allocation2], %s175
        // Predicated region
        $region29: #{tpu_custom_call.1} parent=27 // pred_check
          %p177 = pneg %p54
        $region30: #{tpu_custom_call.1} parent=27 // pred_check_branch
          %179 = sbr.rel (%p177) target = $region32
        $region31: #{tpu_custom_call.1} parent=27 // pred_region
          %180 = dma.done %s173, 128
        $region32: #{tpu_custom_call.1} parent=27 // pred_fallthru
          _
        %s181 = sand.u32 %s69, 1
        %s182 = scalar_lea.sflag [#allocation5], %s181
        %s183 = sand.u32 %s69, 1
        %s184 = smul.addr %s183, 8
        %s185 = scalar_lea.vmem [#allocation4], %s184
        // Predicated region
        $region33: #{tpu_custom_call.1} parent=27 // pred_check
          %p186 = pneg %p82
        $region34: #{tpu_custom_call.1} parent=27 // pred_check_branch
          %188 = sbr.rel (%p186) target = $region36
        $region35: #{tpu_custom_call.1} parent=27 // pred_region
          %189 = dma.done %s182, 128
        $region36: #{tpu_custom_call.1} parent=27 // pred_fallthru
          _
        %s190 = sand.u32 %s41, 1
        %s191 = scalar_lea.sflag [#allocation3], %s190
        %s192 = sand.u32 %s41, 1
        %s193 = smul.addr %s192, 8
        %s194 = scalar_lea.vmem [#allocation2], %s193
        %p195 = pneg %p54
        %p196 = pneg %p51
        %s197 = sand.u32 %s69, 1
        %s198 = scalar_lea.sflag [#allocation5], %s197
        %s199 = sand.u32 %s69, 1
        %s200 = smul.addr %s199, 8
        %s201 = scalar_lea.vmem [#allocation4], %s200
        %p202 = pneg %p82
        %p203 = pneg %p79
        %p204 = pneg %p108
        %p205 = pneg %p105
        %p206 = scmp.lt.s32.totalorder %s23, 1
        %s207 = scalar_select %p206, %s23, 1
        %s208 = smul.addr %s207, 8
        %s209 = scalar_lea.vmem %s2, %s208
        %s210 = sadd.s32 %s23, %s24
        %s211 = sadd.s32 %s23, %s24
        %p212 = scmp.lt.s32.totalorder %s23, 1
        %s213 = scalar_select %p212, %s23, 1
        %s214 = smul.addr %s213, 8
        %s215 = scalar_lea.vmem %s2, %s214
        %p216 = scmp.eq.s32.totalorder %s24, 0
        // Predicated region
        $region37: #{tpu_custom_call.1} parent=27 // pred_check
          %p217 = pneg %p216
        $region38: #{tpu_custom_call.1} parent=27 // pred_check_branch
          %219 = sbr.rel (%p217) target = $region40
        $region39: #{tpu_custom_call.1} parent=27 // pred_region
          %vm220 = vcmask 7168
          %221 = vst.msk [vmem:[%s215] sm:$0xff] %vm220, 0.0
        $region40: #{tpu_custom_call.1} parent=27 // pred_fallthru
          _
        %v222 = vld [vmem:[%s176] sm:$0xff]
        %v223 = vld [vmem:[%s185] sm:$0xff]
        %224 = vmax.xlane.f32.xlu0 %v222
        %v225 = vpop.xlane.xlu0 %224
        %v226 = vsub.f32 %v222, %v225
        %v227 = vmul.f32 %v226, 1.442695
        %v228 = vpow.pop %v227
        %229 = vadd.xlane.f32.xlu0 %v228
        %v230 = vpop.xlane.xlu0 %229
        %v231 = vlog2.pop %v230
        %v232 = vmul.f32 %v231, 0.6931472
        %v233 = vsub.f32 %v226, %v232
        %234 = vmax.xlane.f32.xlu0 %v223
        %v235 = vpop.xlane.xlu0 %234
        %v236 = vsub.f32 %v223, %v235
        %v237 = vmul.f32 %v236, 1.442695
        %v238 = vpow.pop %v237
        %v239 = vmul.f32 %v238, %v233
        %240 = vadd.xlane.f32.xlu0 %v239
        %v241 = vpop.xlane.xlu0 %240
        %242 = vadd.xlane.f32.xlu0 %v238
        %v243 = vpop.xlane.xlu0 %242
        %v244 = vsub.f32 0.0, %v241
        %v245 = vrcp.pop %v243
        %v246 = vmul.f32 %v244, %v245
        %s247 = sadd.s32 %s23, %s24
        %s248 = smul.u32 %s247, 8
        %v249 = vlaneseq
        %v250 = vshrl.u32 %v249, 7
        %v251 = vstv %s248
        %v252 = vadd.s32 %v251, %v250
        %vm253 = vcmp.lt.s32.totalorder %v252, 16
        %v254 = vsel %vm253, %v246, 0.0
        %v255 = vld [vmem:[%s215] sm:$0xff]
        %v256 = vadd.f32 %v255, %v254
        %vm257 = vcmask 7168
        %258 = vst.msk [vmem:[%s215] sm:$0xff] %vm257, %v256
        %p259 = scmp.lt.s32.totalorder %s23, 1
        %s260 = scalar_select %p259, %s23, 1
        %s261 = smul.addr %s260, 8
        %s262 = scalar_lea.vmem %s2, %s261
        // Predicated region
        $region41: #{tpu_custom_call.1} parent=27 // pred_check
          %p263 = pneg %p105
        $region42: #{tpu_custom_call.1} parent=27 // pred_check_branch
          %265 = sbr.rel (%p263) target = $region44
        $region43: #{tpu_custom_call.1} parent=27 // pred_region
          _
        $region44: #{tpu_custom_call.1} parent=27 // pred_fallthru
          _
      $region28: #{tpu_custom_call.1} parent=5 // pred_fallthru
        _
      %p266 = scmp.le.s32.totalorder 2, %s14
      // Predicated region
      $region45: #{tpu_custom_call.1} parent=5 // pred_check
        %p267 = pneg %p266
      $region46: #{tpu_custom_call.1} parent=5 // pred_check_branch
        %269 = sbr.rel (%p267) target = $region48
      $region47: #{tpu_custom_call.1} parent=5 // pred_region
        %s270 = ssub.s32 %s14, 2
        // Predicated region
        $region49: #{tpu_custom_call.1} parent=47 // pred_check
          %p271 = pneg %p111
        $region50: #{tpu_custom_call.1} parent=47 // pred_check_branch
          %273 = sbr.rel (%p271) target = $region52
        $region51: #{tpu_custom_call.1} parent=47 // pred_region
          %p274 = scmp.lt.s32.totalorder %s25, 1
          %s275 = scalar_select %p274, %s25, 1
          %s276 = smul.addr %s275, 8
          %s277 = scalar_lea.vmem %s2, %s276
        $region52: #{tpu_custom_call.1} parent=47 // pred_fallthru
          _
      $region48: #{tpu_custom_call.1} parent=5 // pred_fallthru
        _
    $region6: #{tpu_custom_call.1} parent=1 // loop_footer
      %s18 = sadd.s32 1, %s14
    $region7: #{tpu_custom_call.1} parent=1 // loop_footer_branch
      %13 = sbr.rel target = $region3
    $region8: #{tpu_custom_call.1} parent=1 // loop_exit
      _
    %278 = vsyncpa [#allocation3], 1
    %s279 = scalar_lea.sflag [#allocation3], 1
    %280 = vsyncpa %s279, 1
    %281 = vsyncpa [#allocation5], 1
    %s282 = scalar_lea.sflag [#allocation5], 1
    %283 = vsyncpa %s282, 1

</llo_original>
